<compile_context>
chip_gen: v7x
topology: tpu7x:2x2x1
jax: 0.10.0
libtpu: 0.0.40
codegen_flags: <defaults>
</compile_context>

<pallas_src>
import jax
import jax.numpy as jnp
from jax.experimental import pallas as pl
from jax.experimental.pallas import tpu as pltpu

_NF = 6       # number of categorical fields
_NF_PAD = 8   # field axis padded to the sublane granule


def _round_up(x, m):
    return ((x + m - 1) // m) * m


def _make_kernel(v_pad):
    def kernel(idx_ref, tbl_ref, out_ref):
        # (NF_PAD, tb) lane-dense indices -> (tb, NF_PAD) via one small XLU
        # transpose (batch moves from lanes to sublanes).
        idx_t = idx_ref[...].T                                    # (tb, NF_PAD) int32
        rows = idx_t.shape[0]
        col = jax.lax.broadcasted_iota(jnp.int32, (rows, v_pad), 1)
        # The six per-field one-hots are disjoint in the fused vocabulary
        # (offsets + clamping already applied in the wrapper), so OR-accumulate
        # booleans and cast to f32 once.
        hot = col == idx_t[:, 0:1]
        for f in range(1, _NF):
            hot = jnp.logical_or(hot, col == idx_t[:, f:f + 1])
        # One MXU matmul = all six gathers + concat; lane-dense full-width store.
        out_ref[...] = jnp.dot(hot.astype(jnp.float32), tbl_ref[...],
                               preferred_element_type=jnp.float32)
    return kernel


def _pack_tables(tables, v_pad, d_pad):
    """Block-diagonal packing of the embedding tables, zero padded."""
    packed = jnp.zeros((v_pad, d_pad), jnp.float32)
    r = c = 0
    for t in tables:
        v, d = t.shape
        packed = packed.at[r:r + v, c:c + d].set(t.astype(jnp.float32))
        r += v
        c += d
    return packed


def categorical_embedder(county, is_business, product_type, month, weekday,
                         hour, tables, *, block_b=2048, return_padded=False):
    """tables: tuple of six (V_i, D_i) float32 embedding tables."""
    b = int(county.shape[0])
    vocab = tuple(int(t.shape[0]) for t in tables)
    d_total = sum(int(t.shape[1]) for t in tables)
    v_total = sum(vocab)
    v_pad = max(128, _round_up(v_total, 128))
    d_pad = max(128, _round_up(d_total, 128))

    packed_tbl = _pack_tables(tables, v_pad, d_pad)

    # ---- index preprocessing hoisted out of the kernel: relu(month-1) remap,
    # per-field clamp to [0, V_f-1], and fused-vocab row offset.  One tiny
    # fused XLA pass over the (6, B) int32 indices.
    month = jnp.maximum(month.astype(jnp.int32) - 1, 0)
    raw = (county, is_business, product_type, month, weekday, hour)
    off = 0
    fused_rows = []
    for x, v in zip(raw, vocab):
        x = jnp.clip(x.astype(jnp.int32), 0, v - 1)   # avoid cross-field aliasing
        fused_rows.append(x + off)
        off += v
    idx = jnp.stack(fused_rows, axis=0)               # (6, B), batch on lanes

    # ---- batch tiling: lane dim of the index block must be a multiple of 128
    # (or equal the full array dim), so multi-block tiles are 128-aligned.
    block_b = max(128, _round_up(block_b, 128))
    b8 = _round_up(b, 8)
    b128 = _round_up(b, 128)
    if b128 <= 128:
        tb = b8                                       # single block, full-dim sizes
        b_pad = b8
    else:
        tb = min(block_b, b128)
        if b128 // tb < 2:
            # Split so the "parallel" axis can shard across v7x's two TCs.
            tb = max(128, (b128 // 2) // 128 * 128)
        b_pad = _round_up(b128, tb)
    num_blocks = b_pad // tb

    idx = jnp.pad(idx, ((0, _NF_PAD - _NF), (0, b_pad - b)))   # (8, B_pad)

    out = pl.pallas_call(
        _make_kernel(v_pad),
        out_shape=jax.ShapeDtypeStruct((b_pad, d_pad), jnp.float32),
        grid_spec=pltpu.PrefetchScalarGridSpec(
            num_scalar_prefetch=0,
            grid=(num_blocks,),
            in_specs=[
                pl.BlockSpec((_NF_PAD, tb), lambda i: (0, i)),   # lane-dense indices
                pl.BlockSpec((v_pad, d_pad), lambda i: (0, 0)),  # resident packed table
            ],
            out_specs=pl.BlockSpec((tb, d_pad), lambda i: (i, 0)),
        ),
        compiler_params=pltpu.CompilerParams(
            dimension_semantics=("parallel",),
            vmem_limit_bytes=32 * 1024 * 1024,   # ~2.5 MiB actually used at tb=2048
        ),
    )(idx, packed_tbl)

    if return_padded:
        # Rows >= B and cols >= d_total are padding/garbage; slice downstream
        # where XLA can fuse it into the consumer.
        return out
    # NOTE: this slice is a separate HBM copy of the padded output; use
    # return_padded=True if the consumer can slice/fuse it itself.
    return out[:b, :d_total]


if __name__ == "__main__":
    # module config (small, synthetic)
    num_counties = 16
    num_product_types = 4
    dim_county, dim_business, dim_product = 4, 2, 3
    dim_month, dim_weekday, dim_hour = 5, 3, 6

    table_specs = [
        (num_counties, dim_county),
        (2, dim_business),
        (num_product_types, dim_product),
        (12, dim_month),
        (7, dim_weekday),
        (24, dim_hour),
    ]

    key = jax.random.PRNGKey(0)
    tables = tuple(
        jax.random.normal(jax.random.fold_in(key, i), (v, d), dtype=jnp.float32)
        for i, (v, d) in enumerate(table_specs))

    # inputs: batch of 8 integer categorical codes
    B = 8
    ki = jax.random.split(jax.random.fold_in(key, 100), 6)
    county       = jax.random.randint(ki[0], (B,), 0, num_counties)
    is_business  = jax.random.randint(ki[1], (B,), 0, 2)
    product_type = jax.random.randint(ki[2], (B,), 0, num_product_types)
    month        = jax.random.randint(ki[3], (B,), 1, 13)   # raw 1..12 as in data
    weekday      = jax.random.randint(ki[4], (B,), 0, 7)
    hour         = jax.random.randint(ki[5], (B,), 0, 24)

    out = categorical_embedder(county, is_business, product_type, month,
                               weekday, hour, tables)
    out = jax.block_until_ready(out)

    # pure-JAX reference (torch semantics): relu(month-1) then gather + concat
    month_idx = jnp.maximum(month - 1, 0)
    ref = jnp.concatenate([
        jnp.take(tables[0], county, axis=0),
        jnp.take(tables[1], is_business, axis=0),
        jnp.take(tables[2], product_type, axis=0),
        jnp.take(tables[3], month_idx, axis=0),
        jnp.take(tables[4], weekday, axis=0),
        jnp.take(tables[5], hour, axis=0),
    ], axis=1)
    assert out.shape == ref.shape
    assert jnp.allclose(out, ref, atol=1e-6), "mismatch vs reference"

    print("KERNEL_OK")
</pallas_src>

<mosaic_0001>
module attributes {stable_mosaic.version = 11 : i64} {
  func.func @kernel(%arg0: i32, %arg1: memref<8x8xi32, #tpu.memory_space<vmem>>, %arg2: memref<128x128xf32, #tpu.memory_space<vmem>>, %arg3: memref<8x128xf32, #tpu.memory_space<vmem>>) attributes {dimension_semantics = [#tpu.dimension_semantics<parallel>], iteration_bounds = array<i64: 1>, scalar_prefetch = 0 : i64, scratch_operands = 0 : i64, tpu.core_type = #tpu.core_type<tc>, window_params = [{transform_indices = @transform_0, window_bounds = array<i64: 8, 8>}, {pipeline_mode = #tpu.pipeline_mode<synchronous>, transform_indices = @transform_1, window_bounds = array<i64: 128, 128>}, {transform_indices = @transform_2, window_bounds = array<i64: 8, 128>}]} {
    %c0 = arith.constant 0 : index
    %c0_0 = arith.constant 0 : index
    %0 = vector.load %arg1[%c0, %c0_0] : memref<8x8xi32, #tpu.memory_space<vmem>>, vector<8x8xi32>
    %1 = tpu.transpose %0, [1, 0] : vector<8x8xi32> -> vector<8x8xi32>
    %2 = tpu.iota {dimensions = array<i32: 1>} : vector<8x128xi32>
    %3 = vector.extract_strided_slice %1 {offsets = [0, 0], sizes = [8, 1], strides = [1, 1]} : vector<8x8xi32> to vector<8x1xi32>
    %4 = vector.broadcast %3 : vector<8x1xi32> to vector<8x128xi32>
    %5 = arith.cmpi eq, %2, %4 : vector<8x128xi32>
    %6 = vector.extract_strided_slice %1 {offsets = [0, 1], sizes = [8, 1], strides = [1, 1]} : vector<8x8xi32> to vector<8x1xi32>
    %7 = vector.broadcast %6 : vector<8x1xi32> to vector<8x128xi32>
    %8 = arith.cmpi eq, %2, %7 : vector<8x128xi32>
    %9 = arith.ori %5, %8 : vector<8x128xi1>
    %10 = vector.extract_strided_slice %1 {offsets = [0, 2], sizes = [8, 1], strides = [1, 1]} : vector<8x8xi32> to vector<8x1xi32>
    %11 = vector.broadcast %10 : vector<8x1xi32> to vector<8x128xi32>
    %12 = arith.cmpi eq, %2, %11 : vector<8x128xi32>
    %13 = arith.ori %9, %12 : vector<8x128xi1>
    %14 = vector.extract_strided_slice %1 {offsets = [0, 3], sizes = [8, 1], strides = [1, 1]} : vector<8x8xi32> to vector<8x1xi32>
    %15 = vector.broadcast %14 : vector<8x1xi32> to vector<8x128xi32>
    %16 = arith.cmpi eq, %2, %15 : vector<8x128xi32>
    %17 = arith.ori %13, %16 : vector<8x128xi1>
    %18 = vector.extract_strided_slice %1 {offsets = [0, 4], sizes = [8, 1], strides = [1, 1]} : vector<8x8xi32> to vector<8x1xi32>
    %19 = vector.broadcast %18 : vector<8x1xi32> to vector<8x128xi32>
    %20 = arith.cmpi eq, %2, %19 : vector<8x128xi32>
    %21 = arith.ori %17, %20 : vector<8x128xi1>
    %22 = vector.extract_strided_slice %1 {offsets = [0, 5], sizes = [8, 1], strides = [1, 1]} : vector<8x8xi32> to vector<8x1xi32>
    %23 = vector.broadcast %22 : vector<8x1xi32> to vector<8x128xi32>
    %24 = arith.cmpi eq, %2, %23 : vector<8x128xi32>
    %25 = arith.ori %21, %24 : vector<8x128xi1>
    %26 = arith.extui %25 : vector<8x128xi1> to vector<8x128xi32>
    %27 = arith.sitofp %26 : vector<8x128xi32> to vector<8x128xf32>
    %c0_1 = arith.constant 0 : index
    %c0_2 = arith.constant 0 : index
    %28 = vector.load %arg2[%c0_1, %c0_2] : memref<128x128xf32, #tpu.memory_space<vmem>>, vector<128x128xf32>
    %cst = arith.constant dense<0.000000e+00> : vector<8x128xf32>
    %29 = tpu.matmul %27, %28, %cst {dimension_numbers = #tpu.dot_dimension_numbers<[1], [0], [0], [1], [0, 0, 1, 1], [], []>} : vector<8x128xf32>, vector<128x128xf32>, vector<8x128xf32> -> vector<8x128xf32>
    %c0_3 = arith.constant 0 : index
    %c0_4 = arith.constant 0 : index
    %30 = vector.load %arg3[%c0_3, %c0_4] : memref<8x128xf32, #tpu.memory_space<vmem>>, vector<8x128xf32>
    tpu.vector_store %arg3[%c0_3, %c0_4], %29 {strides = array<i32>} : memref<8x128xf32, #tpu.memory_space<vmem>>, vector<8x128xf32>,
    return
  }
  func.func @transform_0(%arg0: i32) -> (i32, i32) {
    %c0_i32 = arith.constant 0 : i32
    %c0_i32_0 = arith.constant 0 : i32
    return %c0_i32, %arg0 : i32, i32
  }
  func.func @transform_1(%arg0: i32) -> (i32, i32) {
    %c0_i32 = arith.constant 0 : i32
    %c0_i32_0 = arith.constant 0 : i32
    %c0_i32_1 = arith.constant 0 : i32
    return %c0_i32, %c0_i32_0 : i32, i32
  }
  func.func @transform_2(%arg0: i32) -> (i32, i32) {
    %c0_i32 = arith.constant 0 : i32
    %c0_i32_0 = arith.constant 0 : i32
    return %arg0, %c0_i32 : i32, i32
  }
}

</mosaic_0001>

<llo_original>
// kernel: tpu_custom_call.1
$region0: #{tpu_custom_call.1}
  #allocation0 [shape = 'u32[]', space=smem, size = 0x4, offset = 0x4, fixed_abs, tag = 'smem constant byte address 0x4 - core index']
  #allocation1 [shape = 'u32[144,128]{1,0:T(1,128)}', space=vmem, size = 0x12000, scoped, tag = 'internal scratch']
  %s0 = inlined_call_operand.hbm [shape: s32[8,8], index: 0, kind: input, shape index: {}]
  %s1 = inlined_call_operand.hbm [shape: f32[128,128], index: 1, kind: input, shape index: {}]
  %s2 = inlined_call_operand.hbm [shape: f32[8,128], index: 2, kind: output, shape index: {}]
  %s3 = sld [smem:[#allocation0]]
  $region26: #{tpu_custom_call.1} parent=0
    _
  %s5 = ssub.s32 1, %s3
  %s6 = scalar_select 0, %s5, %s3
  $region1: #{tpu_custom_call.1} parent=0
    #allocation2 [shape = 'u8[4096]{0}', space=vmem, size = 0x1000, scoped, tag = 'input window, operand 0, single buffered']
    #allocation3 [shape = 's32[1]{0}', space=sflag, size = 0x4, scoped, tag = 'scoped memory for tpu_custom_call.1']
    #allocation4 [shape = 's32[1]{0}', space=sflag, size = 0x4, scoped, tag = 'scoped memory for tpu_custom_call.1']
    #allocation5 [shape = 'u8[65536]{0}', space=vmem, size = 0x10000, scoped, tag = 'input window, operand 1, single buffered']
    #allocation6 [shape = 's32[1]{0}', space=sflag, size = 0x4, scoped, tag = 'scoped memory for tpu_custom_call.1']
    #allocation7 [shape = 'u8[4096]{0}', space=vmem, size = 0x1000, scoped, tag = 'output window, operand 0, single buffered']
    %7 = vsyncpa [#allocation3], 0
    %8 = vsyncpa [#allocation6], 0
    %9 = vsyncpa [#allocation4], 0
    // Predicated region
    $region2: #{tpu_custom_call.1} parent=1 // pred_check
      _
    $region3: #{tpu_custom_call.1} parent=1 // pred_check_branch
      %11 = sbr.rel (0) target = $region5
    $region4: #{tpu_custom_call.1} parent=1 // pred_region
      %s13 = ssub.s32 128, 128
      %14 = vsyncadd [#allocation3], %s13
      %s16 = sshll.u32 [#allocation2], 4
      %s17 = int_to_ptr.vmem [resolvable:$true] %s16
      %19 = dma.hbm_to_vmem [thread:$0]  %s0, 128, %s17, [#allocation3]
    $region5: #{tpu_custom_call.1} parent=1 // pred_fallthru
      _
    // Predicated region
    $region6: #{tpu_custom_call.1} parent=1 // pred_check
      _
    $region7: #{tpu_custom_call.1} parent=1 // pred_check_branch
      %21 = sbr.rel (0) target = $region9
    $region8: #{tpu_custom_call.1} parent=1 // pred_region
      %s23 = ssub.s32 2048, 2048
      %24 = vsyncadd [#allocation6], %s23
      %s25 = sshll.u32 [#allocation5], 4
      %s26 = int_to_ptr.vmem [resolvable:$true] %s25
      %31 = dma.hbm_to_vmem [thread:$0]  %s1, 2048, %s26, [#allocation6], 128, 128, 8
    $region9: #{tpu_custom_call.1} parent=1 // pred_fallthru
      _
    // Predicated region
    $region10: #{tpu_custom_call.1} parent=1 // pred_check
      _
    $region11: #{tpu_custom_call.1} parent=1 // pred_check_branch
      %33 = sbr.rel (0) target = $region13
    $region12: #{tpu_custom_call.1} parent=1 // pred_region
      %34 = dma.done [#allocation3], 128
    $region13: #{tpu_custom_call.1} parent=1 // pred_fallthru
      _
    // Predicated region
    $region14: #{tpu_custom_call.1} parent=1 // pred_check
      _
    $region15: #{tpu_custom_call.1} parent=1 // pred_check_branch
      %36 = sbr.rel (0) target = $region17
    $region16: #{tpu_custom_call.1} parent=1 // pred_region
      %37 = dma.done [#allocation6], 2048
    $region17: #{tpu_custom_call.1} parent=1 // pred_fallthru
      _
    %v38 = vld [vmem:[#allocation2] sm:$0xff]
    %39 = vxpose.xlu0.b32.start [1/16] %v38, 128
    %40 = vxpose.xlu0.b32.cont [2/16] 0, 128
    %41 = vxpose.xlu0.b32.cont [3/16] 0, 128
    %42 = vxpose.xlu0.b32.cont [4/16] 0, 128
    %43 = vxpose.xlu0.b32.cont [5/16] 0, 128
    %44 = vxpose.xlu0.b32.cont [6/16] 0, 128
    %45 = vxpose.xlu0.b32.cont [7/16] 0, 128
    %46 = vxpose.xlu0.b32.cont [8/16] 0, 128
    %47 = vxpose.xlu0.b32.cont [9/16] 0, 128
    %48 = vxpose.xlu0.b32.cont [10/16] 0, 128
    %49 = vxpose.xlu0.b32.cont [11/16] 0, 128
    %50 = vxpose.xlu0.b32.cont [12/16] 0, 128
    %51 = vxpose.xlu0.b32.cont [13/16] 0, 128
    %52 = vxpose.xlu0.b32.cont [14/16] 0, 128
    %53 = vxpose.xlu0.b32.cont [15/16] 0, 128
    %54 = vxpose.xlu0.b32.end [16/16] 0, 128
    %v55 = vpop.trf.xlu0
    %v56 = vpop.trf.xlu0
    %v57 = vpop.trf.xlu0
    %v58 = vpop.trf.xlu0
    %v59 = vpop.trf.xlu0
    %v60 = vpop.trf.xlu0
    %v61 = vpop.trf.xlu0
    %v62 = vpop.trf.xlu0
    %v63 = vpop.trf.xlu0
    %v64 = vpop.trf.xlu0
    %v65 = vpop.trf.xlu0
    %v66 = vpop.trf.xlu0
    %v67 = vpop.trf.xlu0
    %v68 = vpop.trf.xlu0
    %v69 = vpop.trf.xlu0
    %v70 = vpop.trf.xlu0
    %v71 = vlaneseq
    %v72 = vand.u32 %v71, 127
    %73 = vset.pattern.permute.xlu0 0
    %74 = vperm.xlu0 %73, %v55
    %v75 = vpop.permute.xlu0 %74
    %vm76 = vcmp.eq.s32.totalorder %v72, %v75
    %77 = vset.pattern.permute.xlu0 1
    %78 = vperm.xlu0 %77, %v55
    %v79 = vpop.permute.xlu0 %78
    %vm80 = vcmp.eq.s32.totalorder %v72, %v79
    %vm81 = vmor %vm76, %vm80
    %82 = vset.pattern.permute.xlu0 2
    %83 = vperm.xlu0 %82, %v55
    %v84 = vpop.permute.xlu0 %83
    %vm85 = vcmp.eq.s32.totalorder %v72, %v84
    %vm86 = vmor %vm81, %vm85
    %87 = vset.pattern.permute.xlu0 3
    %88 = vperm.xlu0 %87, %v55
    %v89 = vpop.permute.xlu0 %88
    %vm90 = vcmp.eq.s32.totalorder %v72, %v89
    %vm91 = vmor %vm86, %vm90
    %92 = vset.pattern.permute.xlu0 4
    %93 = vperm.xlu0 %92, %v55
    %v94 = vpop.permute.xlu0 %93
    %vm95 = vcmp.eq.s32.totalorder %v72, %v94
    %vm96 = vmor %vm91, %vm95
    %97 = vset.pattern.permute.xlu0 5
    %98 = vperm.xlu0 %97, %v55
    %v99 = vpop.permute.xlu0 %98
    %vm100 = vcmp.eq.s32.totalorder %v72, %v99
    %vm101 = vmor %vm96, %vm100
    %v102 = vsel %vm101, 1, 0
    %v103 = vcvt.s32.f32 %v102
    %v104 = vld [vmem:[#allocation5] sm:$0xff]
    %v105 = vld [vmem:[#allocation5 + $0x8] sm:$0xff]
    %v106 = vld [vmem:[#allocation5 + $0x10] sm:$0xff]
    %v107 = vld [vmem:[#allocation5 + $0x18] sm:$0xff]
    %v108 = vld [vmem:[#allocation5 + $0x20] sm:$0xff]
    %v109 = vld [vmem:[#allocation5 + $0x28] sm:$0xff]
    %v110 = vld [vmem:[#allocation5 + $0x30] sm:$0xff]
    %v111 = vld [vmem:[#allocation5 + $0x38] sm:$0xff]
    %v112 = vld [vmem:[#allocation5 + $0x40] sm:$0xff]
    %v113 = vld [vmem:[#allocation5 + $0x48] sm:$0xff]
    %v114 = vld [vmem:[#allocation5 + $0x50] sm:$0xff]
    %v115 = vld [vmem:[#allocation5 + $0x58] sm:$0xff]
    %v116 = vld [vmem:[#allocation5 + $0x60] sm:$0xff]
    %v117 = vld [vmem:[#allocation5 + $0x68] sm:$0xff]
    %v118 = vld [vmem:[#allocation5 + $0x70] sm:$0xff]
    %v119 = vld [vmem:[#allocation5 + $0x78] sm:$0xff]
    %120 = vmatprep.subr.mxu0 0.0
    %121 = vmatpush1.msra.mxu0 %v104
    %122 = vmatprep.subr.mxu0 0.0
    %123 = vmatpush1.msra.mxu0 %v105
    %124 = vmatprep.subr.mxu0 0.0
    %125 = vmatpush1.msra.mxu0 %v106
    %126 = vmatprep.subr.mxu0 0.0
    %127 = vmatpush1.msra.mxu0 %v107
    %128 = vmatprep.subr.mxu0 0.0
    %129 = vmatpush1.msra.mxu0 %v108
    %130 = vmatprep.subr.mxu0 0.0
    %131 = vmatpush1.msra.mxu0 %v109
    %132 = vmatprep.subr.mxu0 0.0
    %133 = vmatpush1.msra.mxu0 %v110
    %134 = vmatprep.subr.mxu0 0.0
    %135 = vmatpush1.msra.mxu0 %v111
    %136 = vmatprep.subr.mxu0 0.0
    %137 = vmatpush1.msra.mxu0 %v112
    %138 = vmatprep.subr.mxu0 0.0
    %139 = vmatpush1.msra.mxu0 %v113
    %140 = vmatprep.subr.mxu0 0.0
    %141 = vmatpush1.msra.mxu0 %v114
    %142 = vmatprep.subr.mxu0 0.0
    %143 = vmatpush1.msra.mxu0 %v115
    %144 = vmatprep.subr.mxu0 0.0
    %145 = vmatpush1.msra.mxu0 %v116
    %146 = vmatprep.subr.mxu0 0.0
    %147 = vmatpush1.msra.mxu0 %v117
    %148 = vmatprep.subr.mxu0 0.0
    %149 = vmatpush1.msra.mxu0 %v118
    %150 = vmatprep.subr.mxu0 0.0
    %151 = vmatpush1.msra.mxu0 %v119
    %152 = vmatprep.subr.mxu0 0.0
    %153 = vmatpush1.msra.mxu0 0.0
    %154 = vmatprep.subr.mxu0 0.0
    %155 = vmatpush1.msra.mxu0 0.0
    %156 = vmatprep.subr.mxu0 0.0
    %157 = vmatpush1.msra.mxu0 0.0
    %158 = vmatprep.subr.mxu0 0.0
    %159 = vmatpush1.msra.mxu0 0.0
    %160 = vmatprep.subr.mxu0 0.0
    %161 = vmatpush1.msra.mxu0 0.0
    %162 = vmatprep.subr.mxu0 0.0
    %163 = vmatpush1.msra.mxu0 0.0
    %164 = vmatprep.subr.mxu0 0.0
    %165 = vmatpush1.msra.mxu0 0.0
    %166 = vmatprep.subr.mxu0 0.0
    %167 = vmatpush1.msra.mxu0 0.0
    %168 = vmatprep.subr.mxu0 0.0
    %169 = vmatpush1.msra.mxu0 0.0
    %170 = vmatprep.subr.mxu0 0.0
    %171 = vmatpush1.msra.mxu0 0.0
    %172 = vmatprep.subr.mxu0 0.0
    %173 = vmatpush1.msra.mxu0 0.0
    %174 = vmatprep.subr.mxu0 0.0
    %175 = vmatpush1.msra.mxu0 0.0
    %176 = vmatprep.subr.mxu0 0.0
    %177 = vmatpush1.msra.mxu0 0.0
    %178 = vmatprep.subr.mxu0 0.0
    %179 = vmatpush1.msra.mxu0 0.0
    %180 = vmatprep.subr.mxu0 0.0
    %181 = vmatpush1.msra.mxu0 0.0
    %182 = vmatprep.subr.mxu0 0.0
    %183 = vmatpush1.msra.mxu0 0.0
    %184 = vmatprep.mubr.f32.mxu0 0.0
    %185 = vmatmul.mubr.f32.gmra.mrb[0].mxu0 %v103
    %v186 = vpop.f32.mrb[0].mxu0
    %v187 = vadd.f32 0.0, %v186
    %v188 = vpop.f32.mrb[0].mxu0
    %189 = vdwg.mxu0
    %190 = vst [vmem:[#allocation7] sm:$0xff] %v187
    // Predicated region
    $region18: #{tpu_custom_call.1} parent=1 // pred_check
      _
    $region19: #{tpu_custom_call.1} parent=1 // pred_check_branch
      %192 = sbr.rel (0) target = $region21
    $region20: #{tpu_custom_call.1} parent=1 // pred_region
      %s194 = ssub.s32 128, 128
      %195 = vsyncadd [#allocation4], %s194
      %s197 = sshll.u32 [#allocation7], 4
      %s198 = int_to_ptr.vmem [resolvable:$true] %s197
      %200 = dma.vmem_to_hbm [thread:$0]  %s198, 128, %s2, [#allocation4]
    $region21: #{tpu_custom_call.1} parent=1 // pred_fallthru
      _
    // Predicated region
    $region22: #{tpu_custom_call.1} parent=1 // pred_check
      _
    $region23: #{tpu_custom_call.1} parent=1 // pred_check_branch
      %202 = sbr.rel (0) target = $region25
    $region24: #{tpu_custom_call.1} parent=1 // pred_region
      %203 = dma.done [#allocation4], 128
    $region25: #{tpu_custom_call.1} parent=1 // pred_fallthru
      _
    %204 = vsyncpa [#allocation3], 1
    %205 = vsyncpa [#allocation6], 1
    %206 = vsyncpa [#allocation4], 1

</llo_original>
